<compile_context>
chip_gen: v7x
topology: tpu7x:2x2x1
jax: 0.10.0
libtpu: 0.0.40
codegen_flags: <defaults>
</compile_context>

<pallas_src>
import functools

import jax
import jax.numpy as jnp
from jax.experimental import pallas as pl
from jax.experimental.pallas import tpu as pltpu


# ----------------------------------------------------------------------------
# helpers
# ----------------------------------------------------------------------------
def _round_up(x, m):
    return ((x + m - 1) // m) * m


def _tpu_generation_info():
    """Best-effort trace-time query of TPU generation & VMEM capacity."""
    try:
        kind = jax.devices()[0].device_kind.lower()
    except Exception:
        kind = ""
    old_gen = any(tag in kind for tag in ("v2", "v3", "v4", "v5"))
    try:
        vmem_cap = int(pltpu.get_tpu_info().vmem_capacity_bytes)
    except Exception:
        vmem_cap = 64 * 1024 * 1024            # conservative (v7x per-core size)
    return {
        "mxu_m": 128 if old_gen else 256,      # MXU M width
        "bf16_gates": not old_gen,             # bf16 VPU/EUP exists on v6e+
        "prefer_two_blocks": "v7" in kind,     # 2 TensorCores per chip on v7x
        "vmem_cap": vmem_cap,
    }


def _choose_batch_block(batch, *, mxu_m, prefer_two_blocks):
    """Pick (B_pad, Bb): Bb | B_pad, Bb % 8 == 0, blocks roughly fill the MXU."""
    b_pad = _round_up(batch, 8)
    nb = max(1, pl.cdiv(b_pad, mxu_m))
    if prefer_two_blocks and b_pad >= 16:
        nb = max(nb, 2)                        # shard batch over both v7x TCs
    bb = _round_up(pl.cdiv(b_pad, nb), 8)
    return nb * bb, bb


def _choose_time_block(seq_len, bb, h_pad, vmem_cap):
    """Pick (Tb, T_pad): Tb timesteps per grid step, shrunk to fit VMEM."""
    four_h = 4 * h_pad
    budget = (vmem_cap * 3) // 5               # headroom for compiler scratch

    def need(tb):
        return (2 * tb * bb * four_h * 2       # xw block, double buffered, bf16
                + 2 * tb * bb * h_pad * 2      # out block (full-seq case), bf16
                + 2 * h_pad * four_h * 2       # resident W_hh (2 pipeline bufs)
                + 2 * bb * h_pad * 4)          # f32 h/c state

    tb = min(8, seq_len)
    while tb > 1 and need(tb) > budget:
        tb //= 2
    return tb, pl.cdiv(seq_len, tb) * tb


# ----------------------------------------------------------------------------
# Pallas kernels
# ----------------------------------------------------------------------------
def _matmul_bias_kernel(x_ref, w_ref, b_ref, o_ref, acc_ref):
    """o = x @ w + b, tiled (tm, tn, tk) with f32 accumulation."""
    k = pl.program_id(2)

    @pl.when(k == 0)
    def _():
        acc_ref[...] = jnp.zeros_like(acc_ref)

    acc_ref[...] += jnp.dot(x_ref[...], w_ref[...],
                            preferred_element_type=jnp.float32)

    @pl.when(k == pl.num_programs(2) - 1)
    def _():
        o_ref[...] = (acc_ref[...] + b_ref[...].astype(jnp.float32)
                      ).astype(o_ref.dtype)


def _lstm_recurrence_kernel(xw_ref, whh_ref, out_ref, h_sc, c_sc, *,
                            last_only, t_total, t_block, bf16_gates):
    """Recurrent part of one LSTM layer over a block of t_block timesteps.

    xw_ref : (Tb, Bb, 4H)  precomputed x @ W_ih + b  (bf16)
    whh_ref: (H, 4H)       hidden->hidden weight; constant block index so the
                           pipeline keeps it resident in VMEM (fetched once).
    out_ref: (Tb, Bb, H) or (1, Bb, H)   layer output (bf16)
    h_sc   : (Bb, H) f32   persistent hidden state (per batch block)
    c_sc   : (Bb, H) f32   persistent cell state
    """
    t_blk = pl.program_id(1)                   # time-block index ("arbitrary")
    nt = pl.num_programs(1)

    @pl.when(t_blk == 0)
    def _():
        h_sc[...] = jnp.zeros_like(h_sc)
        c_sc[...] = jnp.zeros_like(c_sc)

    H = h_sc.shape[-1]
    needs_mask = (t_total % t_block) != 0      # only true for padded tail block
    t_base = t_blk * t_block

    def body(i, carry):
        h, c = carry                           # f32 (Bb, H)
        gates = xw_ref[i].astype(jnp.float32) + jnp.dot(
            h.astype(jnp.bfloat16), whh_ref[...],
            preferred_element_type=jnp.float32)            # (Bb, 4H) f32
        # PyTorch gate order: i, f, g, o (slices lane-aligned: H % 128 == 0).
        g = gates.astype(jnp.bfloat16) if bf16_gates else gates
        i_g = jax.nn.sigmoid(g[:, 0 * H:1 * H])
        f_g = jax.nn.sigmoid(g[:, 1 * H:2 * H])
        g_g = jnp.tanh(g[:, 2 * H:3 * H])
        o_g = jax.nn.sigmoid(g[:, 3 * H:4 * H])
        c_new = f_g.astype(jnp.float32) * c + (i_g * g_g).astype(jnp.float32)
        h_new = o_g.astype(jnp.float32) * jnp.tanh(c_new)
        if needs_mask:
            # Padded timesteps must NOT update the state (freeze, don't zero-feed).
            valid = (t_base + i) < t_total
            h_new = jnp.where(valid, h_new, h)
            c_new = jnp.where(valid, c_new, c)
        if not last_only:
            out_ref[i] = h_new.astype(out_ref.dtype)
        return h_new, c_new

    h_f, c_f = jax.lax.fori_loop(0, t_block, body, (h_sc[...], c_sc[...]),
                                 unroll=2)
    h_sc[...] = h_f
    c_sc[...] = c_f

    if last_only:
        # Output block is resident across the time axis: store only once.
        @pl.when(t_blk == nt - 1)
        def _():
            out_ref[0] = h_f.astype(out_ref.dtype)


# ----------------------------------------------------------------------------
# Wrappers
# ----------------------------------------------------------------------------
def matmul_bias(x, w, b, *, out_dtype, tm=256, tn=512, tk=512):
    """(M, K) @ (K, N) + (1, N) -> (M, N), tiled over M, N (parallel) and K."""
    M, K = x.shape
    N = w.shape[1]
    tm = min(tm, _round_up(M, 8))
    tn = min(tn, _round_up(N, 128))
    tk = min(tk, _round_up(K, 128))
    Mp, Kp, Np = _round_up(M, tm), _round_up(K, tk), _round_up(N, tn)

    if (Mp, Kp) != (M, K):
        x = jnp.pad(x, ((0, Mp - M), (0, Kp - K)))
    if (Kp, Np) != (K, N):
        w = jnp.pad(w, ((0, Kp - K), (0, Np - N)))
    if Np != N:
        b = jnp.pad(b, ((0, 0), (0, Np - N)))

    out = pl.pallas_call(
        _matmul_bias_kernel,
        out_shape=jax.ShapeDtypeStruct((Mp, Np), out_dtype),
        grid_spec=pltpu.PrefetchScalarGridSpec(
            num_scalar_prefetch=0,
            grid=(Mp // tm, Np // tn, Kp // tk),
            in_specs=[
                pl.BlockSpec((tm, tk), lambda i, j, k: (i, k)),
                pl.BlockSpec((tk, tn), lambda i, j, k: (k, j)),
                pl.BlockSpec((1, tn), lambda i, j, k: (0, j)),
            ],
            out_specs=pl.BlockSpec((tm, tn), lambda i, j, k: (i, j)),
            scratch_shapes=[pltpu.VMEM((tm, tn), jnp.float32)],
        ),
        compiler_params=pltpu.CompilerParams(
            dimension_semantics=("parallel", "parallel", "arbitrary")),
    )(x, w, b)

    if (Mp, Np) != (M, N):
        out = out[:M, :N]
    return out


def lstm_recurrence(xw, w_hh_t, *, last_only, t_total, t_block, b_block,
                    bf16_gates, vmem_cap):
    """Run the recurrent part of one LSTM layer.

    xw     : (T_pad, B_pad, 4*H_pad) bf16  precomputed x @ W_ih + b
    w_hh_t : (H_pad, 4*H_pad)        bf16
    returns: (T_pad, B_pad, H_pad) bf16, or (1, B_pad, H_pad) if last_only.
    """
    T_pad, B_pad, four_h = xw.shape
    H_pad = four_h // 4
    Tb, Bb = t_block, b_block
    nt, nb = T_pad // Tb, B_pad // Bb
    out_T = 1 if last_only else T_pad
    out_rows = 1 if last_only else Tb

    if last_only:
        out_spec = pl.BlockSpec((1, Bb, H_pad), lambda b, t: (0, b, 0))
    else:
        out_spec = pl.BlockSpec((Tb, Bb, H_pad), lambda b, t: (t, b, 0))

    # VMEM footprint: double-buffered xw/out blocks + resident W_hh + f32 h/c.
    vmem_need = (2 * Tb * Bb * four_h * 2
                 + 2 * out_rows * Bb * H_pad * 2
                 + 2 * H_pad * four_h * 2
                 + 2 * Bb * H_pad * 4)
    vmem_limit = int(min(vmem_cap - (2 << 20),
                         max(2 * vmem_need + (2 << 20), 24 << 20)))

    cost = pl.CostEstimate(
        flops=int(2 * T_pad * B_pad * H_pad * four_h
                  + 10 * T_pad * B_pad * H_pad),
        transcendentals=int(5 * T_pad * B_pad * H_pad),
        bytes_accessed=int(T_pad * B_pad * four_h * 2
                           + out_T * B_pad * H_pad * 2
                           + H_pad * four_h * 2),
    )

    kernel = functools.partial(_lstm_recurrence_kernel, last_only=last_only,
                               t_total=t_total, t_block=Tb,
                               bf16_gates=bf16_gates)
    return pl.pallas_call(
        kernel,
        out_shape=jax.ShapeDtypeStruct((out_T, B_pad, H_pad), jnp.bfloat16),
        grid_spec=pltpu.PrefetchScalarGridSpec(
            num_scalar_prefetch=0,
            grid=(nb, nt),                     # batch blocks outer (parallel),
            in_specs=[                         # time blocks inner (arbitrary)
                pl.BlockSpec((Tb, Bb, four_h), lambda b, t: (t, b, 0)),
                # Constant block index: fetched once, stays resident in VMEM.
                pl.BlockSpec((H_pad, four_h), lambda b, t: (0, 0)),
            ],
            out_specs=out_spec,
            scratch_shapes=[
                pltpu.VMEM((Bb, H_pad), jnp.float32),   # h state
                pltpu.VMEM((Bb, H_pad), jnp.float32),   # c state
            ],
        ),
        compiler_params=pltpu.CompilerParams(
            dimension_semantics=("parallel", "arbitrary"),
            vmem_limit_bytes=vmem_limit),
        cost_estimate=cost,
    )(xw, w_hh_t)


class LSTMLMParams:
    """Deterministic parameter init matching nn.Module shapes (lane-padded)."""

    def __init__(self, key, vocabulary_size, embedding_dim, lstm_layers,
                 lstm_dim, padding_idx, dropout_prob=0.0):
        self.vocabulary_size = vocabulary_size
        self.embedding_dim = embedding_dim
        self.lstm_layers = lstm_layers
        self.lstm_dim = lstm_dim
        self.padding_idx = padding_idx
        self.dropout_prob = dropout_prob        # identity in eval mode

        self.e_pad = _round_up(embedding_dim, 128)
        self.h_pad = _round_up(lstm_dim, 128)
        self.v_pad = _round_up(vocabulary_size, 128)

        keys = jax.random.split(key, 3 + 4 * lstm_layers)
        k_iter = iter(keys)

        # Embedding table (vocab, E), padding row zeroed, columns padded.
        emb = 0.1 * jax.random.normal(next(k_iter),
                                      (vocabulary_size, embedding_dim),
                                      dtype=jnp.float32)
        emb = emb.at[padding_idx].set(0.0)
        emb = jnp.pad(emb, ((0, 0), (0, self.e_pad - embedding_dim)))
        self.embedding = emb.astype(jnp.bfloat16)               # (V, E_pad)

        H = lstm_dim

        def pad_gates_t(w, d_in, d_in_pad):
            # w: (4H, d_in) PyTorch layout, gate order i,f,g,o ->
            # (d_in_pad, 4*H_pad) with each gate slice lane-aligned, zero padded.
            cols = []
            for g in range(4):
                blk = jnp.transpose(w[g * H:(g + 1) * H, :])     # (d_in, H)
                blk = jnp.pad(blk, ((0, d_in_pad - d_in),
                                    (0, self.h_pad - H)))
                cols.append(blk)
            return jnp.concatenate(cols, axis=1)

        def pad_bias(bvec):
            parts = [jnp.pad(bvec[g * H:(g + 1) * H], (0, self.h_pad - H))
                     for g in range(4)]
            return jnp.concatenate(parts).reshape(1, 4 * self.h_pad)

        self.w_ih_t, self.w_hh_t, self.b = [], [], []
        for layer in range(lstm_layers):
            d_in = embedding_dim if layer == 0 else lstm_dim
            d_in_pad = self.e_pad if layer == 0 else self.h_pad
            w_ih = 0.1 * jax.random.normal(next(k_iter),
                                           (4 * H, d_in), jnp.float32)
            w_hh = 0.1 * jax.random.normal(next(k_iter),
                                           (4 * H, H), jnp.float32)
            b_ih = 0.1 * jax.random.normal(next(k_iter), (4 * H,), jnp.float32)
            b_hh = 0.1 * jax.random.normal(next(k_iter), (4 * H,), jnp.float32)
            self.w_ih_t.append(pad_gates_t(w_ih, d_in, d_in_pad)
                               .astype(jnp.bfloat16))            # (D_in_pad, 4H_pad)
            self.w_hh_t.append(pad_gates_t(w_hh, H, self.h_pad)
                               .astype(jnp.bfloat16))            # (H_pad, 4H_pad)
            self.b.append(pad_bias(b_ih + b_hh))                 # f32 (1, 4H_pad)

        # Output projection (vocab, H) + bias, padded and transposed.
        w_out = 0.1 * jax.random.normal(next(k_iter),
                                        (vocabulary_size, lstm_dim), jnp.float32)
        b_out = 0.1 * jax.random.normal(next(k_iter),
                                        (vocabulary_size,), jnp.float32)
        self.w_out_t = jnp.pad(
            jnp.transpose(w_out),
            ((0, self.h_pad - lstm_dim),
             (0, self.v_pad - vocabulary_size))).astype(jnp.bfloat16)  # (H_pad, V_pad)
        self.b_out = jnp.pad(b_out, (0, self.v_pad - vocabulary_size)
                             ).reshape(1, self.v_pad)                  # f32 (1, V_pad)


def lstm_lm_forward(params, x_tokens):
    """x_tokens: int32 (B, T) -> logits (B, V).  Eval mode (dropout = identity)."""
    B, T = x_tokens.shape
    H_pad = params.h_pad

    info = _tpu_generation_info()
    B_pad, Bb = _choose_batch_block(B, mxu_m=info["mxu_m"],
                                    prefer_two_blocks=info["prefer_two_blocks"])
    Tb, T_pad = _choose_time_block(T, Bb, H_pad, info["vmem_cap"])

    # Embedding lookup directly in (T, B) order (only tokens get transposed,
    # avoiding a full (B,T,E) -> (T,B,E) HBM round trip of the activations).
    emb = jnp.take(params.embedding, x_tokens.T, axis=0)        # (T, B, E_pad) bf16
    if (T_pad, B_pad) != (T, B):
        # Batch padding is exact (padded rows sliced off at the end); padded
        # timesteps are masked inside the recurrence kernel (state frozen).
        emb = jnp.pad(emb, ((0, T_pad - T), (0, B_pad - B), (0, 0)))
    h_seq = emb                                                 # (T_pad, B_pad, E_pad)

    for layer in range(params.lstm_layers):
        last_only = layer == params.lstm_layers - 1
        d_in = h_seq.shape[-1]
        # Hoisted input projection: one big MXU matmul over all T_pad*B_pad rows.
        xw = matmul_bias(h_seq.reshape(T_pad * B_pad, d_in),
                         params.w_ih_t[layer], params.b[layer],
                         out_dtype=jnp.bfloat16)
        xw = xw.reshape(T_pad, B_pad, 4 * H_pad)
        # Recurrent part; top layer emits only the final hidden state.
        h_seq = lstm_recurrence(xw, params.w_hh_t[layer], last_only=last_only,
                                t_total=T, t_block=Tb, b_block=Bb,
                                bf16_gates=info["bf16_gates"],
                                vmem_cap=info["vmem_cap"])
        # TODO(synk): inter-layer LSTM dropout is a no-op in eval mode; omitted.

    last_h = h_seq[0]                                           # (B_pad, H_pad) == lstm_out[:, -1, :]
    # Dropout in eval mode is identity.
    logits = matmul_bias(last_h, params.w_out_t, params.b_out,
                         out_dtype=jnp.float32)                 # (B_pad, V_pad)
    return logits[:B, :params.vocabulary_size]


if __name__ == "__main__":
    # Small, module-consistent shapes.
    VOCAB = 64
    EMBED_DIM = 32
    LSTM_LAYERS = 2
    LSTM_DIM = 32
    PADDING_IDX = 0
    BATCH = 2
    SEQ = 8

    key = jax.random.PRNGKey(0)
    k_params, k_tokens = jax.random.split(key)

    params = LSTMLMParams(k_params, VOCAB, EMBED_DIM, LSTM_LAYERS,
                          LSTM_DIM, PADDING_IDX)

    x = jax.random.randint(k_tokens, (BATCH, SEQ), 0, VOCAB, dtype=jnp.int32)

    logits = lstm_lm_forward(params, x)
    logits = jax.block_until_ready(logits)

    assert logits.shape == (BATCH, VOCAB)
    assert logits.dtype == jnp.float32
    print("KERNEL_OK")
</pallas_src>

<mosaic_0001>
module attributes {stable_mosaic.version = 11 : i64} {
  func.func @_matmul_bias_kernel(%arg0: i32, %arg1: i32, %arg2: i32, %arg3: memref<64x128xbf16, #tpu.memory_space<vmem>>, %arg4: memref<128x512xbf16, #tpu.memory_space<vmem>>, %arg5: memref<1x512xf32, #tpu.memory_space<vmem>>, %arg6: memref<64x512xbf16, #tpu.memory_space<vmem>>, %arg7: memref<64x512xf32, #tpu.memory_space<vmem>>) attributes {dimension_semantics = [#tpu.dimension_semantics<parallel>, #tpu.dimension_semantics<parallel>, #tpu.dimension_semantics<arbitrary>], iteration_bounds = array<i64: 1, 1, 1>, scalar_prefetch = 0 : i64, scratch_operands = 1 : i64, tpu.core_type = #tpu.core_type<tc>, window_params = [{transform_indices = @transform_0, window_bounds = array<i64: 64, 128>}, {transform_indices = @transform_1, window_bounds = array<i64: 128, 512>}, {transform_indices = @transform_2, window_bounds = array<i64: 1, 512>}, {transform_indices = @transform_3, window_bounds = array<i64: 64, 512>}]} {
    %c0_i32 = arith.constant 0 : i32
    %0 = arith.cmpi eq, %arg2, %c0_i32 : i32
    %1 = arith.extui %0 : i1 to i32
    %c0_i32_0 = arith.constant 0 : i32
    %2 = arith.cmpi ne, %1, %c0_i32_0 : i32
    scf.if %2 {
      %cst_10 = arith.constant 0.000000e+00 : f32
      %12 = vector.broadcast %cst_10 : f32 to vector<64x512xf32>
      %c0_11 = arith.constant 0 : index
      %c0_12 = arith.constant 0 : index
      %13 = vector.load %arg7[%c0_11, %c0_12] : memref<64x512xf32, #tpu.memory_space<vmem>>, vector<64x512xf32>
      tpu.vector_store %arg7[%c0_11, %c0_12], %12 {strides = array<i32>} : memref<64x512xf32, #tpu.memory_space<vmem>>, vector<64x512xf32>,
    } else {
    }
    %c0 = arith.constant 0 : index
    %c0_1 = arith.constant 0 : index
    %3 = vector.load %arg7[%c0, %c0_1] : memref<64x512xf32, #tpu.memory_space<vmem>>, vector<64x512xf32>
    %c0_2 = arith.constant 0 : index
    %c0_3 = arith.constant 0 : index
    %4 = vector.load %arg3[%c0_2, %c0_3] : memref<64x128xbf16, #tpu.memory_space<vmem>>, vector<64x128xbf16>
    %c0_4 = arith.constant 0 : index
    %c0_5 = arith.constant 0 : index
    %5 = vector.load %arg4[%c0_4, %c0_5] : memref<128x512xbf16, #tpu.memory_space<vmem>>, vector<128x512xbf16>
    %cst = arith.constant dense<0.000000e+00> : vector<64x512xf32>
    %6 = tpu.matmul %4, %5, %cst {dimension_numbers = #tpu.dot_dimension_numbers<[1], [0], [0], [1], [0, 0, 1, 1], [], []>} : vector<64x128xbf16>, vector<128x512xbf16>, vector<64x512xf32> -> vector<64x512xf32>
    %7 = arith.addf %3, %6 : vector<64x512xf32>
    %c0_6 = arith.constant 0 : index
    %c0_7 = arith.constant 0 : index
    %8 = vector.load %arg7[%c0_6, %c0_7] : memref<64x512xf32, #tpu.memory_space<vmem>>, vector<64x512xf32>
    tpu.vector_store %arg7[%c0_6, %c0_7], %7 {strides = array<i32>} : memref<64x512xf32, #tpu.memory_space<vmem>>, vector<64x512xf32>,
    %c0_i32_8 = arith.constant 0 : i32
    %9 = arith.cmpi eq, %arg2, %c0_i32_8 : i32
    %10 = arith.extui %9 : i1 to i32
    %c0_i32_9 = arith.constant 0 : i32
    %11 = arith.cmpi ne, %10, %c0_i32_9 : i32
    scf.if %11 {
      %c0_10 = arith.constant 0 : index
      %c0_11 = arith.constant 0 : index
      %12 = vector.load %arg7[%c0_10, %c0_11] : memref<64x512xf32, #tpu.memory_space<vmem>>, vector<64x512xf32>
      %c0_12 = arith.constant 0 : index
      %c0_13 = arith.constant 0 : index
      %13 = vector.load %arg5[%c0_12, %c0_13] : memref<1x512xf32, #tpu.memory_space<vmem>>, vector<1x512xf32>
      %14 = vector.broadcast %13 : vector<1x512xf32> to vector<64x512xf32>
      %15 = arith.addf %12, %14 : vector<64x512xf32>
      %16 = arith.truncf %15 : vector<64x512xf32> to vector<64x512xbf16>
      %c0_14 = arith.constant 0 : index
      %c0_15 = arith.constant 0 : index
      %17 = vector.load %arg6[%c0_14, %c0_15] : memref<64x512xbf16, #tpu.memory_space<vmem>>, vector<64x512xbf16>
      tpu.vector_store %arg6[%c0_14, %c0_15], %16 {strides = array<i32>} : memref<64x512xbf16, #tpu.memory_space<vmem>>, vector<64x512xbf16>,
    } else {
    }
    return
  }
  func.func @transform_0(%arg0: i32, %arg1: i32, %arg2: i32) -> (i32, i32) {
    %c0_i32 = arith.constant 0 : i32
    return %arg0, %arg2 : i32, i32
  }
  func.func @transform_1(%arg0: i32, %arg1: i32, %arg2: i32) -> (i32, i32) {
    %c0_i32 = arith.constant 0 : i32
    return %arg2, %arg1 : i32, i32
  }
  func.func @transform_2(%arg0: i32, %arg1: i32, %arg2: i32) -> (i32, i32) {
    %c0_i32 = arith.constant 0 : i32
    %c0_i32_0 = arith.constant 0 : i32
    return %c0_i32, %arg1 : i32, i32
  }
  func.func @transform_3(%arg0: i32, %arg1: i32, %arg2: i32) -> (i32, i32) {
    %c0_i32 = arith.constant 0 : i32
    return %arg0, %arg1 : i32, i32
  }
}

</mosaic_0001>

<llo_original>
// kernel: tpu_custom_call.1
$region0: #{tpu_custom_call.1}
  #allocation0 [shape = 'u32[]', space=smem, size = 0x4, offset = 0x4, fixed_abs, tag = 'smem constant byte address 0x4 - core index']
  #allocation1 [shape = 'u32[144,128]{1,0:T(1,128)}', space=vmem, size = 0x12000, scoped, tag = 'internal scratch']
  #allocation2 [shape = 'f32[64,512]{1,0:T(8,128)}', space=vmem, size = 0x20000, scoped, tag = 'scratch operand']
  %s0 = inlined_call_operand.hbm [shape: bf16[64,128], index: 0, kind: input, shape index: {}]
  %s1 = inlined_call_operand.hbm [shape: bf16[128,512], index: 1, kind: input, shape index: {}]
  %s2 = inlined_call_operand.vmem [shape: f32[1,512], index: 2, kind: input, shape index: {}]
  %s3 = inlined_call_operand.hbm [shape: bf16[64,512], index: 3, kind: output, shape index: {}]
  %s4 = sld [smem:[#allocation0]]
  $region38: #{tpu_custom_call.1} parent=0
    _
  %s6 = ssub.s32 1, %s4
  %s7 = scalar_select 0, %s6, %s4
  $region1: #{tpu_custom_call.1} parent=0
    #allocation3 [shape = 'u8[16384]{0}', space=vmem, size = 0x4000, scoped, tag = 'input window, operand 0, single buffered']
    #allocation4 [shape = 's32[1]{0}', space=sflag, size = 0x4, scoped, tag = 'scoped memory for tpu_custom_call.1']
    #allocation5 [shape = 's32[1]{0}', space=sflag, size = 0x4, scoped, tag = 'scoped memory for tpu_custom_call.1']
    #allocation6 [shape = 'u8[131072]{0}', space=vmem, size = 0x20000, scoped, tag = 'input window, operand 1, single buffered']
    #allocation7 [shape = 's32[1]{0}', space=sflag, size = 0x4, scoped, tag = 'scoped memory for tpu_custom_call.1']
    #allocation8 [shape = 'u8[65536]{0}', space=vmem, size = 0x10000, scoped, tag = 'output window, operand 0, single buffered']
    %8 = vsyncpa [#allocation4], 0
    %9 = vsyncpa [#allocation7], 0
    %10 = vsyncpa [#allocation5], 0
    // Predicated region
    $region2: #{tpu_custom_call.1} parent=1 // pred_check
      _
    $region3: #{tpu_custom_call.1} parent=1 // pred_check_branch
      %12 = sbr.rel (0) target = $region5
    $region4: #{tpu_custom_call.1} parent=1 // pred_region
      %s14 = ssub.s32 512, 512
      %15 = vsyncadd [#allocation4], %s14
      %s16 = sshll.u32 [#allocation3], 4
      %s17 = int_to_ptr.vmem [resolvable:$true] %s16
      %22 = dma.hbm_to_vmem [thread:$0]  %s0, 512, %s17, [#allocation4], 64, 64, 4
    $region5: #{tpu_custom_call.1} parent=1 // pred_fallthru
      _
    // Predicated region
    $region6: #{tpu_custom_call.1} parent=1 // pred_check
      _
    $region7: #{tpu_custom_call.1} parent=1 // pred_check_branch
      %24 = sbr.rel (0) target = $region9
    $region8: #{tpu_custom_call.1} parent=1 // pred_region
      %s26 = ssub.s32 4096, 4096
      %27 = vsyncadd [#allocation7], %s26
      %s28 = sshll.u32 [#allocation6], 4
      %s29 = int_to_ptr.vmem [resolvable:$true] %s28
      %34 = dma.hbm_to_vmem [thread:$0]  %s1, 4096, %s29, [#allocation7], 256, 256, 16
    $region9: #{tpu_custom_call.1} parent=1 // pred_fallthru
      _
    // Predicated region
    $region10: #{tpu_custom_call.1} parent=1 // pred_check
      _
    $region11: #{tpu_custom_call.1} parent=1 // pred_check_branch
      %36 = sbr.rel (0) target = $region13
    $region12: #{tpu_custom_call.1} parent=1 // pred_region
      _
    $region13: #{tpu_custom_call.1} parent=1 // pred_fallthru
      _
    // Predicated region
    $region14: #{tpu_custom_call.1} parent=1 // pred_check
      _
    $region15: #{tpu_custom_call.1} parent=1 // pred_check_branch
      %38 = sbr.rel (0) target = $region17
    $region16: #{tpu_custom_call.1} parent=1 // pred_region
      %39 = dma.done [#allocation4], 512
    $region17: #{tpu_custom_call.1} parent=1 // pred_fallthru
      _
    // Predicated region
    $region18: #{tpu_custom_call.1} parent=1 // pred_check
      _
    $region19: #{tpu_custom_call.1} parent=1 // pred_check_branch
      %41 = sbr.rel (0) target = $region21
    $region20: #{tpu_custom_call.1} parent=1 // pred_region
      %42 = dma.done [#allocation7], 4096
    $region21: #{tpu_custom_call.1} parent=1 // pred_fallthru
      _
    %p44 = scmp.eq.s32.totalorder 0, 0
    // Predicated region
    $region22: #{tpu_custom_call.1} parent=1 // pred_check
      %p45 = pneg %p44
    $region23: #{tpu_custom_call.1} parent=1 // pred_check_branch
      %47 = sbr.rel (%p45) target = $region25
    $region24: #{tpu_custom_call.1} parent=1 // pred_region
      %48 = vst [vmem:[#allocation2] sm:$0xff] 0.0
      %49 = vst [vmem:[#allocation2 + $0x8] sm:$0xff] 0.0
      %50 = vst [vmem:[#allocation2 + $0x10] sm:$0xff] 0.0
      %51 = vst [vmem:[#allocation2 + $0x18] sm:$0xff] 0.0
      %52 = vst [vmem:[#allocation2 + $0x20] sm:$0xff] 0.0
      %53 = vst [vmem:[#allocation2 + $0x28] sm:$0xff] 0.0
      %54 = vst [vmem:[#allocation2 + $0x30] sm:$0xff] 0.0
      %55 = vst [vmem:[#allocation2 + $0x38] sm:$0xff] 0.0
      %56 = vst [vmem:[#allocation2 + $0x40] sm:$0xff] 0.0
      %57 = vst [vmem:[#allocation2 + $0x48] sm:$0xff] 0.0
      %58 = vst [vmem:[#allocation2 + $0x50] sm:$0xff] 0.0
      %59 = vst [vmem:[#allocation2 + $0x58] sm:$0xff] 0.0
      %60 = vst [vmem:[#allocation2 + $0x60] sm:$0xff] 0.0
      %61 = vst [vmem:[#allocation2 + $0x68] sm:$0xff] 0.0
      %62 = vst [vmem:[#allocation2 + $0x70] sm:$0xff] 0.0
      %63 = vst [vmem:[#allocation2 + $0x78] sm:$0xff] 0.0
      %64 = vst [vmem:[#allocation2 + $0x80] sm:$0xff] 0.0
      %65 = vst [vmem:[#allocation2 + $0x88] sm:$0xff] 0.0
      %66 = vst [vmem:[#allocation2 + $0x90] sm:$0xff] 0.0
      %67 = vst [vmem:[#allocation2 + $0x98] sm:$0xff] 0.0
      %68 = vst [vmem:[#allocation2 + $0xa0] sm:$0xff] 0.0
      %69 = vst [vmem:[#allocation2 + $0xa8] sm:$0xff] 0.0
      %70 = vst [vmem:[#allocation2 + $0xb0] sm:$0xff] 0.0
      %71 = vst [vmem:[#allocation2 + $0xb8] sm:$0xff] 0.0
      %72 = vst [vmem:[#allocation2 + $0xc0] sm:$0xff] 0.0
      %73 = vst [vmem:[#allocation2 + $0xc8] sm:$0xff] 0.0
      %74 = vst [vmem:[#allocation2 + $0xd0] sm:$0xff] 0.0
      %75 = vst [vmem:[#allocation2 + $0xd8] sm:$0xff] 0.0
      %76 = vst [vmem:[#allocation2 + $0xe0] sm:$0xff] 0.0
      %77 = vst [vmem:[#allocation2 + $0xe8] sm:$0xff] 0.0
      %78 = vst [vmem:[#allocation2 + $0xf0] sm:$0xff] 0.0
      %79 = vst [vmem:[#allocation2 + $0xf8] sm:$0xff] 0.0
    $region25: #{tpu_custom_call.1} parent=1 // pred_fallthru
      _
    %v80 = vld [vmem:[#allocation2] sm:$0xff]
    %v81 = vld [vmem:[#allocation2 + $0x8] sm:$0xff]
    %v82 = vld [vmem:[#allocation2 + $0x10] sm:$0xff]
    %v83 = vld [vmem:[#allocation2 + $0x18] sm:$0xff]
    %v84 = vld [vmem:[#allocation2 + $0x20] sm:$0xff]
    %v85 = vld [vmem:[#allocation2 + $0x28] sm:$0xff]
    %v86 = vld [vmem:[#allocation2 + $0x30] sm:$0xff]
    %v87 = vld [vmem:[#allocation2 + $0x38] sm:$0xff]
    %v88 = vld [vmem:[#allocation2 + $0x40] sm:$0xff]
    %v89 = vld [vmem:[#allocation2 + $0x48] sm:$0xff]
    %v90 = vld [vmem:[#allocation2 + $0x50] sm:$0xff]
    %v91 = vld [vmem:[#allocation2 + $0x58] sm:$0xff]
    %v92 = vld [vmem:[#allocation2 + $0x60] sm:$0xff]
    %v93 = vld [vmem:[#allocation2 + $0x68] sm:$0xff]
    %v94 = vld [vmem:[#allocation2 + $0x70] sm:$0xff]
    %v95 = vld [vmem:[#allocation2 + $0x78] sm:$0xff]
    %v96 = vld [vmem:[#allocation2 + $0x80] sm:$0xff]
    %v97 = vld [vmem:[#allocation2 + $0x88] sm:$0xff]
    %v98 = vld [vmem:[#allocation2 + $0x90] sm:$0xff]
    %v99 = vld [vmem:[#allocation2 + $0x98] sm:$0xff]
    %v100 = vld [vmem:[#allocation2 + $0xa0] sm:$0xff]
    %v101 = vld [vmem:[#allocation2 + $0xa8] sm:$0xff]
    %v102 = vld [vmem:[#allocation2 + $0xb0] sm:$0xff]
    %v103 = vld [vmem:[#allocation2 + $0xb8] sm:$0xff]
    %v104 = vld [vmem:[#allocation2 + $0xc0] sm:$0xff]
    %v105 = vld [vmem:[#allocation2 + $0xc8] sm:$0xff]
    %v106 = vld [vmem:[#allocation2 + $0xd0] sm:$0xff]
    %v107 = vld [vmem:[#allocation2 + $0xd8] sm:$0xff]
    %v108 = vld [vmem:[#allocation2 + $0xe0] sm:$0xff]
    %v109 = vld [vmem:[#allocation2 + $0xe8] sm:$0xff]
    %v110 = vld [vmem:[#allocation2 + $0xf0] sm:$0xff]
    %v111 = vld [vmem:[#allocation2 + $0xf8] sm:$0xff]
    %v112 = vld [vmem:[#allocation3] sm:$0xf]
    %v113 = vld [vmem:[#allocation3 + $0x4] sm:$0xf]
    %v114 = vld [vmem:[#allocation3 + $0x8] sm:$0xf]
    %v115 = vld [vmem:[#allocation3 + $0xc] sm:$0xf]
    %v116 = vld [vmem:[#allocation3 + $0x10] sm:$0xf]
    %v117 = vld [vmem:[#allocation3 + $0x14] sm:$0xf]
    %v118 = vld [vmem:[#allocation3 + $0x18] sm:$0xf]
    %v119 = vld [vmem:[#allocation3 + $0x1c] sm:$0xf]
    %v120 = vld [vmem:[#allocation6] sm:$0xff]
    %v121 = vld [vmem:[#allocation6 + $0x8] sm:$0xff]
    %v122 = vld [vmem:[#allocation6 + $0x10] sm:$0xff]
    %v123 = vld [vmem:[#allocation6 + $0x18] sm:$0xff]
    %v124 = vld [vmem:[#allocation6 + $0x20] sm:$0xff]
    %v125 = vld [vmem:[#allocation6 + $0x28] sm:$0xff]
    %v126 = vld [vmem:[#allocation6 + $0x30] sm:$0xff]
    %v127 = vld [vmem:[#allocation6 + $0x38] sm:$0xff]
    %v128 = vld [vmem:[#allocation6 + $0x40] sm:$0xff]
    %v129 = vld [vmem:[#allocation6 + $0x48] sm:$0xff]
    %v130 = vld [vmem:[#allocation6 + $0x50] sm:$0xff]
    %v131 = vld [vmem:[#allocation6 + $0x58] sm:$0xff]
    %v132 = vld [vmem:[#allocation6 + $0x60] sm:$0xff]
    %v133 = vld [vmem:[#allocation6 + $0x68] sm:$0xff]
    %v134 = vld [vmem:[#allocation6 + $0x70] sm:$0xff]
    %v135 = vld [vmem:[#allocation6 + $0x78] sm:$0xff]
    %v136 = vld [vmem:[#allocation6 + $0x80] sm:$0xff]
    %v137 = vld [vmem:[#allocation6 + $0x88] sm:$0xff]
    %v138 = vld [vmem:[#allocation6 + $0x90] sm:$0xff]
    %v139 = vld [vmem:[#allocation6 + $0x98] sm:$0xff]
    %v140 = vld [vmem:[#allocation6 + $0xa0] sm:$0xff]
    %v141 = vld [vmem:[#allocation6 + $0xa8] sm:$0xff]
    %v142 = vld [vmem:[#allocation6 + $0xb0] sm:$0xff]
    %v143 = vld [vmem:[#allocation6 + $0xb8] sm:$0xff]
    %v144 = vld [vmem:[#allocation6 + $0xc0] sm:$0xff]
    %v145 = vld [vmem:[#allocation6 + $0xc8] sm:$0xff]
    %v146 = vld [vmem:[#allocation6 + $0xd0] sm:$0xff]
    %v147 = vld [vmem:[#allocation6 + $0xd8] sm:$0xff]
    %v148 = vld [vmem:[#allocation6 + $0xe0] sm:$0xff]
    %v149 = vld [vmem:[#allocation6 + $0xe8] sm:$0xff]
    %v150 = vld [vmem:[#allocation6 + $0xf0] sm:$0xff]
    %v151 = vld [vmem:[#allocation6 + $0xf8] sm:$0xff]
    %v160 = vunpack.c.l.b16 %v112
    %v161 = vunpack.c.l.b16 %v113
    %v162 = vunpack.c.l.b16 %v114
    %v163 = vunpack.c.l.b16 %v115
    %v164 = vunpack.c.l.b16 %v116
    %v165 = vunpack.c.l.b16 %v117
    %v166 = vunpack.c.l.b16 %v118
    %v167 = vunpack.c.l.b16 %v119
    %v168 = vpack.c.b16 %v161, %v160
    %v169 = vpack.c.b16 %v163, %v162
    %v170 = vpack.c.b16 %v165, %v164
    %v171 = vpack.c.b16 %v167, %v166
    %v208 = vunpack.c.l.b16 %v120
    %v209 = vunpack.c.h.b16 %v120
    %v210 = vunpack.c.l.b16 %v121
    %v211 = vunpack.c.h.b16 %v121
    %v212 = vunpack.c.l.b16 %v122
    %v213 = vunpack.c.h.b16 %v122
    %v214 = vunpack.c.l.b16 %v123
    %v215 = vunpack.c.h.b16 %v123
    %v216 = vunpack.c.l.b16 %v124
    %v217 = vunpack.c.h.b16 %v124
    %v218 = vunpack.c.l.b16 %v125
    %v219 = vunpack.c.h.b16 %v125
    %v220 = vunpack.c.l.b16 %v126
    %v221 = vunpack.c.h.b16 %v126
    %v222 = vunpack.c.l.b16 %v127
    %v223 = vunpack.c.h.b16 %v127
    %v224 = vunpack.c.l.b16 %v128
    %v225 = vunpack.c.h.b16 %v128
    %v226 = vunpack.c.l.b16 %v129
    %v227 = vunpack.c.h.b16 %v129
    %v228 = vunpack.c.l.b16 %v130
    %v229 = vunpack.c.h.b16 %v130
    %v230 = vunpack.c.l.b16 %v131
    %v231 = vunpack.c.h.b16 %v131
    %v232 = vunpack.c.l.b16 %v132
    %v233 = vunpack.c.h.b16 %v132
    %v234 = vunpack.c.l.b16 %v133
    %v235 = vunpack.c.h.b16 %v133
    %v236 = vunpack.c.l.b16 %v134
    %v237 = vunpack.c.h.b16 %v134
    %v238 = vunpack.c.l.b16 %v135
    %v239 = vunpack.c.h.b16 %v135
    %v240 = vunpack.c.l.b16 %v136
    %v241 = vunpack.c.h.b16 %v136
    %v242 = vunpack.c.l.b16 %v137
    %v243 = vunpack.c.h.b16 %v137
    %v244 = vunpack.c.l.b16 %v138
    %v245 = vunpack.c.h.b16 %v138
    %v246 = vunpack.c.l.b16 %v139
    %v247 = vunpack.c.h.b16 %v139
    %v248 = vunpack.c.l.b16 %v140
    %v249 = vunpack.c.h.b16 %v140
    %v250 = vunpack.c.l.b16 %v141
    %v251 = vunpack.c.h.b16 %v141
    %v252 = vunpack.c.l.b16 %v142
    %v253 = vunpack.c.h.b16 %v142
    %v254 = vunpack.c.l.b16 %v143
    %v255 = vunpack.c.h.b16 %v143
    %v256 = vunpack.c.l.b16 %v144
    %v257 = vunpack.c.h.b16 %v144
    %v258 = vunpack.c.l.b16 %v145
    %v259 = vunpack.c.h.b16 %v145
    %v260 = vunpack.c.l.b16 %v146
    %v261 = vunpack.c.h.b16 %v146
    %v262 = vunpack.c.l.b16 %v147
    %v263 = vunpack.c.h.b16 %v147
    %v264 = vunpack.c.l.b16 %v148
    %v265 = vunpack.c.h.b16 %v148
    %v266 = vunpack.c.l.b16 %v149
    %v267 = vunpack.c.h.b16 %v149
    %v268 = vunpack.c.l.b16 %v150
    %v269 = vunpack.c.h.b16 %v150
    %v270 = vunpack.c.l.b16 %v151
    %v271 = vunpack.c.h.b16 %v151
    %v272 = vpack.c.b16 %v212, %v208
    %v273 = vpack.c.b16 %v213, %v209
    %v274 = vpack.c.b16 %v214, %v210
    %v275 = vpack.c.b16 %v215, %v211
    %v276 = vpack.c.b16 %v220, %v216
    %v277 = vpack.c.b16 %v221, %v217
    %v278 = vpack.c.b16 %v222, %v218
    %v279 = vpack.c.b16 %v223, %v219
    %v280 = vpack.c.b16 %v228, %v224
    %v281 = vpack.c.b16 %v229, %v225
    %v282 = vpack.c.b16 %v230, %v226
    %v283 = vpack.c.b16 %v231, %v227
    %v284 = vpack.c.b16 %v236, %v232
    %v285 = vpack.c.b16 %v237, %v233
    %v286 = vpack.c.b16 %v238, %v234
    %v287 = vpack.c.b16 %v239, %v235
    %v288 = vpack.c.b16 %v244, %v240
    %v289 = vpack.c.b16 %v245, %v241
    %v290 = vpack.c.b16 %v246, %v242
    %v291 = vpack.c.b16 %v247, %v243
    %v292 = vpack.c.b16 %v252, %v248
    %v293 = vpack.c.b16 %v253, %v249
    %v294 = vpack.c.b16 %v254, %v250
    %v295 = vpack.c.b16 %v255, %v251
    %v296 = vpack.c.b16 %v260, %v256
    %v297 = vpack.c.b16 %v261, %v257
    %v298 = vpack.c.b16 %v262, %v258
    %v299 = vpack.c.b16 %v263, %v259
    %v300 = vpack.c.b16 %v268, %v264
    %v301 = vpack.c.b16 %v269, %v265
    %v302 = vpack.c.b16 %v270, %v266
    %v303 = vpack.c.b16 %v271, %v267
    %336 = vmatprep.subr.bf16.mxu0 %v273
    %337 = vmatpush1.bf16.msra.mxu0 %v272
    %338 = vmatprep.subr.bf16.mxu0 %v277
    %339 = vmatpush1.bf16.msra.mxu0 %v276
    %340 = vmatprep.subr.bf16.mxu0 %v281
    %341 = vmatpush1.bf16.msra.mxu0 %v280
    %342 = vmatprep.subr.bf16.mxu0 %v285
    %343 = vmatpush1.bf16.msra.mxu0 %v284
    %344 = vmatprep.subr.bf16.mxu0 %v289
    %345 = vmatpush1.bf16.msra.mxu0 %v288
    %346 = vmatprep.subr.bf16.mxu0 %v293
    %347 = vmatpush1.bf16.msra.mxu0 %v292
    %348 = vmatprep.subr.bf16.mxu0 %v297
    %349 = vmatpush1.bf16.msra.mxu0 %v296
    %350 = vmatprep.subr.bf16.mxu0 %v301
    %351 = vmatpush1.bf16.msra.mxu0 %v300
    %352 = vmatprep.subr.bf16.mxu0 0
    %353 = vmatpush1.bf16.msra.mxu0 0
    %354 = vmatprep.subr.bf16.mxu0 0
    %355 = vmatpush1.bf16.msra.mxu0 0
    %356 = vmatprep.subr.bf16.mxu0 0
    %357 = vmatpush1.bf16.msra.mxu0 0
    %358 = vmatprep.subr.bf16.mxu0 0
    %359 = vmatpush1.bf16.msra.mxu0 0
    %360 = vmatprep.subr.bf16.mxu0 0
    %361 = vmatpush1.bf16.msra.mxu0 0
    %362 = vmatprep.subr.bf16.mxu0 0
    %363 = vmatpush1.bf16.msra.mxu0 0
    %364 = vmatprep.subr.bf16.mxu0 0
    %365 = vmatpush1.bf16.msra.mxu0 0
    %366 = vmatprep.subr.bf16.mxu0 0
    %367 = vmatpush1.bf16.msra.mxu0 0
    %368 = vmatprep.mubr.bf16.mxu0 0
    %369 = vmatmul.mubr.bf16.gmra.mrb[0].mxu0 %v168
    %v370 = vpop.f32.mrb[0].mxu0
    %v371 = vadd.f32 0.0, %v370
    %v372 = vpop.f32.mrb[0].mxu0
    %v373 = vadd.f32 0.0, %v372
    %v374 = vpop.f32.mrb[0].mxu0
    %v375 = vadd.f32 0.0, %v374
    %v376 = vpop.f32.mrb[0].mxu0
    %v377 = vadd.f32 0.0, %v376
    %378 = vmatprep.mubr.bf16.mxu0 0
    %379 = vmatmul.mubr.bf16.gmra.mrb[0].mxu0 %v169
    %v380 = vpop.f32.mrb[0].mxu0
    %v381 = vadd.f32 0.0, %v380
    %v382 = vpop.f32.mrb[0].mxu0
    %v383 = vadd.f32 0.0, %v382
    %v384 = vpop.f32.mrb[0].mxu0
    %v385 = vadd.f32 0.0, %v384
    %v386 = vpop.f32.mrb[0].mxu0
    %v387 = vadd.f32 0.0, %v386
    %388 = vmatprep.mubr.bf16.mxu0 0
    %389 = vmatmul.mubr.bf16.gmra.mrb[0].mxu0 %v170
    %v390 = vpop.f32.mrb[0].mxu0
    %v391 = vadd.f32 0.0, %v390
    %v392 = vpop.f32.mrb[0].mxu0
    %v393 = vadd.f32 0.0, %v392
    %v394 = vpop.f32.mrb[0].mxu0
    %v395 = vadd.f32 0.0, %v394
    %v396 = vpop.f32.mrb[0].mxu0
    %v397 = vadd.f32 0.0, %v396
    %398 = vmatprep.mubr.bf16.mxu0 0
    %399 = vmatmul.mubr.bf16.gmra.mrb[0].mxu0 %v171
    %v400 = vpop.f32.mrb[0].mxu0
    %v401 = vadd.f32 0.0, %v400
    %v402 = vpop.f32.mrb[0].mxu0
    %v403 = vadd.f32 0.0, %v402
    %v404 = vpop.f32.mrb[0].mxu0
    %v405 = vadd.f32 0.0, %v404
    %v406 = vpop.f32.mrb[0].mxu0
    %v407 = vadd.f32 0.0, %v406
    %408 = vdwg.mxu0
    %409 = vmatprep.subr.bf16.mxu0 %v275
    %410 = vmatpush1.bf16.msra.mxu0 %v274
    %411 = vmatprep.subr.bf16.mxu0 %v279
    %412 = vmatpush1.bf16.msra.mxu0 %v278
    %413 = vmatprep.subr.bf16.mxu0 %v283
    %414 = vmatpush1.bf16.msra.mxu0 %v282
    %415 = vmatprep.subr.bf16.mxu0 %v287
    %416 = vmatpush1.bf16.msra.mxu0 %v286
    %417 = vmatprep.subr.bf16.mxu0 %v291
    %418 = vmatpush1.bf16.msra.mxu0 %v290
    %419 = vmatprep.subr.bf16.mxu0 %v295
    %420 = vmatpush1.bf16.msra.mxu0 %v294
    %421 = vmatprep.subr.bf16.mxu0 %v299
    %422 = vmatpush1.bf16.msra.mxu0 %v298
    %423 = vmatprep.subr.bf16.mxu0 %v303
    %424 = vmatpush1.bf16.msra.mxu0 %v302
    %425 = vmatprep.subr.bf16.mxu0 0
    %426 = vmatpush1.bf16.msra.mxu0 0
    %427 = vmatprep.subr.bf16.mxu0 0
    %428 = vmatpush1.bf16.msra.mxu0 0
    %429 = vmatprep.subr.bf16.mxu0 0
    %430 = vmatpush1.bf16.msra.mxu0 0
    %431 = vmatprep.subr.bf16.mxu0 0
    %432 = vmatpush1.bf16.msra.mxu0 0
    %433 = vmatprep.subr.bf16.mxu0 0
    %434 = vmatpush1.bf16.msra.mxu0 0
    %435 = vmatprep.subr.bf16.mxu0 0
    %436 = vmatpush1.bf16.msra.mxu0 0
    %437 = vmatprep.subr.bf16.mxu0 0
    %438 = vmatpush1.bf16.msra.mxu0 0
    %439 = vmatprep.subr.bf16.mxu0 0
    %440 = vmatpush1.bf16.msra.mxu0 0
    %441 = vmatprep.mubr.bf16.mxu0 0
    %442 = vmatmul.mubr.bf16.gmra.mrb[0].mxu0 %v168
    %v443 = vpop.f32.mrb[0].mxu0
    %v444 = vadd.f32 0.0, %v443
    %v445 = vpop.f32.mrb[0].mxu0
    %v446 = vadd.f32 0.0, %v445
    %v447 = vpop.f32.mrb[0].mxu0
    %v448 = vadd.f32 0.0, %v447
    %v449 = vpop.f32.mrb[0].mxu0
    %v450 = vadd.f32 0.0, %v449
    %451 = vmatprep.mubr.bf16.mxu0 0
    %452 = vmatmul.mubr.bf16.gmra.mrb[0].mxu0 %v169
    %v453 = vpop.f32.mrb[0].mxu0
    %v454 = vadd.f32 0.0, %v453
    %v455 = vpop.f32.mrb[0].mxu0
    %v456 = vadd.f32 0.0, %v455
    %v457 = vpop.f32.mrb[0].mxu0
    %v458 = vadd.f32 0.0, %v457
    %v459 = vpop.f32.mrb[0].mxu0
    %v460 = vadd.f32 0.0, %v459
    %461 = vmatprep.mubr.bf16.mxu0 0
    %462 = vmatmul.mubr.bf16.gmra.mrb[0].mxu0 %v170
    %v463 = vpop.f32.mrb[0].mxu0
    %v464 = vadd.f32 0.0, %v463
    %v465 = vpop.f32.mrb[0].mxu0
    %v466 = vadd.f32 0.0, %v465
    %v467 = vpop.f32.mrb[0].mxu0
    %v468 = vadd.f32 0.0, %v467
    %v469 = vpop.f32.mrb[0].mxu0
    %v470 = vadd.f32 0.0, %v469
    %471 = vmatprep.mubr.bf16.mxu0 0
    %472 = vmatmul.mubr.bf16.gmra.mrb[0].mxu0 %v171
    %v473 = vpop.f32.mrb[0].mxu0
    %v474 = vadd.f32 0.0, %v473
    %v475 = vpop.f32.mrb[0].mxu0
    %v476 = vadd.f32 0.0, %v475
    %v477 = vpop.f32.mrb[0].mxu0
    %v478 = vadd.f32 0.0, %v477
    %v479 = vpop.f32.mrb[0].mxu0
    %v480 = vadd.f32 0.0, %v479
    %481 = vdwg.mxu0
    %v482 = vadd.f32 %v80, %v371
    %v483 = vadd.f32 %v81, %v373
    %v484 = vadd.f32 %v82, %v444
    %v485 = vadd.f32 %v83, %v446
    %v486 = vadd.f32 %v84, %v375
    %v487 = vadd.f32 %v85, %v377
    %v488 = vadd.f32 %v86, %v448
    %v489 = vadd.f32 %v87, %v450
    %v490 = vadd.f32 %v88, %v381
    %v491 = vadd.f32 %v89, %v383
    %v492 = vadd.f32 %v90, %v454
    %v493 = vadd.f32 %v91, %v456
    %v494 = vadd.f32 %v92, %v385
    %v495 = vadd.f32 %v93, %v387
    %v496 = vadd.f32 %v94, %v458
    %v497 = vadd.f32 %v95, %v460
    %v498 = vadd.f32 %v96, %v391
    %v499 = vadd.f32 %v97, %v393
    %v500 = vadd.f32 %v98, %v464
    %v501 = vadd.f32 %v99, %v466
    %v502 = vadd.f32 %v100, %v395
    %v503 = vadd.f32 %v101, %v397
    %v504 = vadd.f32 %v102, %v468
    %v505 = vadd.f32 %v103, %v470
    %v506 = vadd.f32 %v104, %v401
    %v507 = vadd.f32 %v105, %v403
    %v508 = vadd.f32 %v106, %v474
    %v509 = vadd.f32 %v107, %v476
    %v510 = vadd.f32 %v108, %v405
    %v511 = vadd.f32 %v109, %v407
    %v512 = vadd.f32 %v110, %v478
    %v513 = vadd.f32 %v111, %v480
    %514 = vst [vmem:[#allocation2] sm:$0xff] %v482
    %515 = vst [vmem:[#allocation2 + $0x8] sm:$0xff] %v483
    %516 = vst [vmem:[#allocation2 + $0x10] sm:$0xff] %v484
    %517 = vst [vmem:[#allocation2 + $0x18] sm:$0xff] %v485
    %518 = vst [vmem:[#allocation2 + $0x20] sm:$0xff] %v486
    %519 = vst [vmem:[#allocation2 + $0x28] sm:$0xff] %v487
    %520 = vst [vmem:[#allocation2 + $0x30] sm:$0xff] %v488
    %521 = vst [vmem:[#allocation2 + $0x38] sm:$0xff] %v489
    %522 = vst [vmem:[#allocation2 + $0x40] sm:$0xff] %v490
    %523 = vst [vmem:[#allocation2 + $0x48] sm:$0xff] %v491
    %524 = vst [vmem:[#allocation2 + $0x50] sm:$0xff] %v492
    %525 = vst [vmem:[#allocation2 + $0x58] sm:$0xff] %v493
    %526 = vst [vmem:[#allocation2 + $0x60] sm:$0xff] %v494
    %527 = vst [vmem:[#allocation2 + $0x68] sm:$0xff] %v495
    %528 = vst [vmem:[#allocation2 + $0x70] sm:$0xff] %v496
    %529 = vst [vmem:[#allocation2 + $0x78] sm:$0xff] %v497
    %530 = vst [vmem:[#allocation2 + $0x80] sm:$0xff] %v498
    %531 = vst [vmem:[#allocation2 + $0x88] sm:$0xff] %v499
    %532 = vst [vmem:[#allocation2 + $0x90] sm:$0xff] %v500
    %533 = vst [vmem:[#allocation2 + $0x98] sm:$0xff] %v501
    %534 = vst [vmem:[#allocation2 + $0xa0] sm:$0xff] %v502
    %535 = vst [vmem:[#allocation2 + $0xa8] sm:$0xff] %v503
    %536 = vst [vmem:[#allocation2 + $0xb0] sm:$0xff] %v504
    %537 = vst [vmem:[#allocation2 + $0xb8] sm:$0xff] %v505
    %538 = vst [vmem:[#allocation2 + $0xc0] sm:$0xff] %v506
    %539 = vst [vmem:[#allocation2 + $0xc8] sm:$0xff] %v507
    %540 = vst [vmem:[#allocation2 + $0xd0] sm:$0xff] %v508
    %541 = vst [vmem:[#allocation2 + $0xd8] sm:$0xff] %v509
    %542 = vst [vmem:[#allocation2 + $0xe0] sm:$0xff] %v510
    %543 = vst [vmem:[#allocation2 + $0xe8] sm:$0xff] %v511
    %544 = vst [vmem:[#allocation2 + $0xf0] sm:$0xff] %v512
    %545 = vst [vmem:[#allocation2 + $0xf8] sm:$0xff] %v513
    // Predicated region
    $region26: #{tpu_custom_call.1} parent=1 // pred_check
      %p546 = pneg %p44
    $region27: #{tpu_custom_call.1} parent=1 // pred_check_branch
      %548 = sbr.rel (%p546) target = $region29
    $region28: #{tpu_custom_call.1} parent=1 // pred_region
      %v549 = vld [vmem:[#allocation2] sm:$0xff]
      %v550 = vld [vmem:[#allocation2 + $0x8] sm:$0xff]
      %v551 = vld [vmem:[#allocation2 + $0x10] sm:$0xff]
      %v552 = vld [vmem:[#allocation2 + $0x18] sm:$0xff]
      %v553 = vld [vmem:[#allocation2 + $0x20] sm:$0xff]
      %v554 = vld [vmem:[#allocation2 + $0x28] sm:$0xff]
      %v555 = vld [vmem:[#allocation2 + $0x30] sm:$0xff]
      %v556 = vld [vmem:[#allocation2 + $0x38] sm:$0xff]
      %v557 = vld [vmem:[#allocation2 + $0x40] sm:$0xff]
      %v558 = vld [vmem:[#allocation2 + $0x48] sm:$0xff]
      %v559 = vld [vmem:[#allocation2 + $0x50] sm:$0xff]
      %v560 = vld [vmem:[#allocation2 + $0x58] sm:$0xff]
      %v561 = vld [vmem:[#allocation2 + $0x60] sm:$0xff]
      %v562 = vld [vmem:[#allocation2 + $0x68] sm:$0xff]
      %v563 = vld [vmem:[#allocation2 + $0x70] sm:$0xff]
      %v564 = vld [vmem:[#allocation2 + $0x78] sm:$0xff]
      %v565 = vld [vmem:[#allocation2 + $0x80] sm:$0xff]
      %v566 = vld [vmem:[#allocation2 + $0x88] sm:$0xff]
      %v567 = vld [vmem:[#allocation2 + $0x90] sm:$0xff]
      %v568 = vld [vmem:[#allocation2 + $0x98] sm:$0xff]
      %v569 = vld [vmem:[#allocation2 + $0xa0] sm:$0xff]
      %v570 = vld [vmem:[#allocation2 + $0xa8] sm:$0xff]
      %v571 = vld [vmem:[#allocation2 + $0xb0] sm:$0xff]
      %v572 = vld [vmem:[#allocation2 + $0xb8] sm:$0xff]
      %v573 = vld [vmem:[#allocation2 + $0xc0] sm:$0xff]
      %v574 = vld [vmem:[#allocation2 + $0xc8] sm:$0xff]
      %v575 = vld [vmem:[#allocation2 + $0xd0] sm:$0xff]
      %v576 = vld [vmem:[#allocation2 + $0xd8] sm:$0xff]
      %v577 = vld [vmem:[#allocation2 + $0xe0] sm:$0xff]
      %v578 = vld [vmem:[#allocation2 + $0xe8] sm:$0xff]
      %v579 = vld [vmem:[#allocation2 + $0xf0] sm:$0xff]
      %v580 = vld [vmem:[#allocation2 + $0xf8] sm:$0xff]
      %v581 = vld [vmem:[%s2] sm:$0xf]
      %v583 = vlaneseq
      %v584 = vshrl.u32 %v583, 7
      %v585 = vsub.s32 0, %v584
      %v586 = vrot.slane %v581, %v585
      %v587 = vlaneseq
      %v588 = vshrl.u32 %v587, 7
      %v589 = vsub.s32 1, %v588
      %v590 = vrot.slane %v581, %v589
      %v591 = vlaneseq
      %v592 = vshrl.u32 %v591, 7
      %v593 = vsub.s32 2, %v592
      %v594 = vrot.slane %v581, %v593
      %v595 = vlaneseq
      %v596 = vshrl.u32 %v595, 7
      %v597 = vsub.s32 3, %v596
      %v598 = vrot.slane %v581, %v597
      %v603 = vadd.f32 %v549, %v586
      %v604 = vadd.f32 %v550, %v590
      %v605 = vadd.f32 %v551, %v594
      %v606 = vadd.f32 %v552, %v598
      %v607 = vadd.f32 %v553, %v586
      %v608 = vadd.f32 %v554, %v590
      %v609 = vadd.f32 %v555, %v594
      %v610 = vadd.f32 %v556, %v598
      %v611 = vadd.f32 %v557, %v586
      %v612 = vadd.f32 %v558, %v590
      %v613 = vadd.f32 %v559, %v594
      %v614 = vadd.f32 %v560, %v598
      %v615 = vadd.f32 %v561, %v586
      %v616 = vadd.f32 %v562, %v590
      %v617 = vadd.f32 %v563, %v594
      %v618 = vadd.f32 %v564, %v598
      %v619 = vadd.f32 %v565, %v586
      %v620 = vadd.f32 %v566, %v590
      %v621 = vadd.f32 %v567, %v594
      %v622 = vadd.f32 %v568, %v598
      %v623 = vadd.f32 %v569, %v586
      %v624 = vadd.f32 %v570, %v590
      %v625 = vadd.f32 %v571, %v594
      %v626 = vadd.f32 %v572, %v598
      %v627 = vadd.f32 %v573, %v586
      %v628 = vadd.f32 %v574, %v590
      %v629 = vadd.f32 %v575, %v594
      %v630 = vadd.f32 %v576, %v598
      %v631 = vadd.f32 %v577, %v586
      %v632 = vadd.f32 %v578, %v590
      %v633 = vadd.f32 %v579, %v594
      %v634 = vadd.f32 %v580, %v598
      %v635 = vpack.c.bf16 %v607, %v603
      %v636 = vpack.c.bf16 %v608, %v604
      %v637 = vpack.c.bf16 %v609, %v605
      %v638 = vpack.c.bf16 %v610, %v606
      %v639 = vpack.c.bf16 %v615, %v611
      %v640 = vpack.c.bf16 %v616, %v612
      %v641 = vpack.c.bf16 %v617, %v613
      %v642 = vpack.c.bf16 %v618, %v614
      %v643 = vpack.c.bf16 %v623, %v619
      %v644 = vpack.c.bf16 %v624, %v620
      %v645 = vpack.c.bf16 %v625, %v621
      %v646 = vpack.c.bf16 %v626, %v622
      %v647 = vpack.c.bf16 %v631, %v627
      %v648 = vpack.c.bf16 %v632, %v628
      %v649 = vpack.c.bf16 %v633, %v629
      %v650 = vpack.c.bf16 %v634, %v630
      %v667 = vunpack.c.l.b16 %v635
      %v668 = vunpack.c.l.b16 %v636
      %v669 = vunpack.c.l.b16 %v637
      %v670 = vunpack.c.l.b16 %v638
      %v671 = vunpack.c.h.b16 %v635
      %v672 = vunpack.c.h.b16 %v636
      %v673 = vunpack.c.h.b16 %v637
      %v674 = vunpack.c.h.b16 %v638
      %v675 = vunpack.c.l.b16 %v639
      %v676 = vunpack.c.l.b16 %v640
      %v677 = vunpack.c.l.b16 %v641
      %v678 = vunpack.c.l.b16 %v642
      %v679 = vunpack.c.h.b16 %v639
      %v680 = vunpack.c.h.b16 %v640
      %v681 = vunpack.c.h.b16 %v641
      %v682 = vunpack.c.h.b16 %v642
      %v683 = vunpack.c.l.b16 %v643
      %v684 = vunpack.c.l.b16 %v644
      %v685 = vunpack.c.l.b16 %v645
      %v686 = vunpack.c.l.b16 %v646
      %v687 = vunpack.c.h.b16 %v643
      %v688 = vunpack.c.h.b16 %v644
      %v689 = vunpack.c.h.b16 %v645
      %v690 = vunpack.c.h.b16 %v646
      %v691 = vunpack.c.l.b16 %v647
      %v692 = vunpack.c.l.b16 %v648
      %v693 = vunpack.c.l.b16 %v649
      %v694 = vunpack.c.l.b16 %v650
      %v695 = vunpack.c.h.b16 %v647
      %v696 = vunpack.c.h.b16 %v648
      %v697 = vunpack.c.h.b16 %v649
      %v698 = vunpack.c.h.b16 %v650
      %v699 = vpack.c.b16 %v668, %v667
      %v700 = vpack.c.b16 %v670, %v669
      %v701 = vpack.c.b16 %v672, %v671
      %v702 = vpack.c.b16 %v674, %v673
      %v703 = vpack.c.b16 %v676, %v675
      %v704 = vpack.c.b16 %v678, %v677
      %v705 = vpack.c.b16 %v680, %v679
      %v706 = vpack.c.b16 %v682, %v681
      %v707 = vpack.c.b16 %v684, %v683
      %v708 = vpack.c.b16 %v686, %v685
      %v709 = vpack.c.b16 %v688, %v687
      %v710 = vpack.c.b16 %v690, %v689
      %v711 = vpack.c.b16 %v692, %v691
      %v712 = vpack.c.b16 %v694, %v693
      %v713 = vpack.c.b16 %v696, %v695
      %v714 = vpack.c.b16 %v698, %v697
      %731 = vst [vmem:[#allocation8] sm:$0xff] %v699
      %732 = vst [vmem:[#allocation8 + $0x8] sm:$0xff] %v700
      %733 = vst [vmem:[#allocation8 + $0x10] sm:$0xff] %v701
      %734 = vst [vmem:[#allocation8 + $0x18] sm:$0xff] %v702
      %735 = vst [vmem:[#allocation8 + $0x20] sm:$0xff] %v703
      %736 = vst [vmem:[#allocation8 + $0x28] sm:$0xff] %v704
      %737 = vst [vmem:[#allocation8 + $0x30] sm:$0xff] %v705
      %738 = vst [vmem:[#allocation8 + $0x38] sm:$0xff] %v706
      %739 = vst [vmem:[#allocation8 + $0x40] sm:$0xff] %v707
      %740 = vst [vmem:[#allocation8 + $0x48] sm:$0xff] %v708
      %741 = vst [vmem:[#allocation8 + $0x50] sm:$0xff] %v709
      %742 = vst [vmem:[#allocation8 + $0x58] sm:$0xff] %v710
      %743 = vst [vmem:[#allocation8 + $0x60] sm:$0xff] %v711
      %744 = vst [vmem:[#allocation8 + $0x68] sm:$0xff] %v712
      %745 = vst [vmem:[#allocation8 + $0x70] sm:$0xff] %v713
      %746 = vst [vmem:[#allocation8 + $0x78] sm:$0xff] %v714
    $region29: #{tpu_custom_call.1} parent=1 // pred_fallthru
      _
    // Predicated region
    $region30: #{tpu_custom_call.1} parent=1 // pred_check
      _
    $region31: #{tpu_custom_call.1} parent=1 // pred_check_branch
      %748 = sbr.rel (0) target = $region33
    $region32: #{tpu_custom_call.1} parent=1 // pred_region
      %s750 = ssub.s32 2048, 2048
      %751 = vsyncadd [#allocation5], %s750
      %s752 = sshll.u32 [#allocation8], 4
      %s753 = int_to_ptr.vmem [resolvable:$true] %s752
      %758 = dma.vmem_to_hbm [thread:$0]  %s753, 2048, %s3, [#allocation5], 256, 256, 16
    $region33: #{tpu_custom_call.1} parent=1 // pred_fallthru
      _
    // Predicated region
    $region34: #{tpu_custom_call.1} parent=1 // pred_check
      _
    $region35: #{tpu_custom_call.1} parent=1 // pred_check_branch
      %760 = sbr.rel (0) target = $region37
    $region36: #{tpu_custom_call.1} parent=1 // pred_region
      %761 = dma.done [#allocation5], 2048
    $region37: #{tpu_custom_call.1} parent=1 // pred_fallthru
      _
    %762 = vsyncpa [#allocation4], 1
    %763 = vsyncpa [#allocation7], 1
    %764 = vsyncpa [#allocation5], 1

</llo_original>
